<compile_context>
chip_gen: v7x
topology: tpu7x:2x2x1
jax: 0.10.0
libtpu: 0.0.40
codegen_flags: <defaults>
</compile_context>

<pallas_src>
import functools

import jax
import jax.numpy as jnp
from jax.experimental import pallas as pl
from jax.experimental.pallas import tpu as pltpu

LANE = 128
MAX_BLOCK_ROWS = 2048  # (2048,128) f32 = 1 MiB/block; 2 inputs x 2 buffers = 4 MiB VMEM


def _round_up(x, m):
    return (x + m - 1) // m * m


def _sublane_tile(*dtypes):
    # Second-to-last block dim must be a multiple of 8*(4/itemsize)
    # (8 for f32, 16 for bf16, 32 for int8/fp8) unless it equals the array extent.
    t = 8
    for d in dtypes:
        item = jnp.dtype(d).itemsize
        if item in (1, 2, 4):
            t = max(t, 8 * (4 // item))
    return t


def _ccc_kernel(*refs, n_elems, eps, block_rows, needs_mask, noise_mode):
    if noise_mode == "input":
        (seed_ref, pred_ref, gt_ref, noise_ref, out_ref,
         acc_p, acc_g, acc_pp, acc_gg, acc_pg) = refs
    else:
        (seed_ref, pred_ref, gt_ref, out_ref,
         acc_p, acc_g, acc_pp, acc_gg, acc_pg) = refs
        noise_ref = None

    i = pl.program_id(0)
    last = pl.num_programs(0) - 1

    @pl.when(i == 0)
    def _init():
        acc_p[...] = jnp.zeros_like(acc_p)
        acc_g[...] = jnp.zeros_like(acc_g)
        acc_pp[...] = jnp.zeros_like(acc_pp)
        acc_gg[...] = jnp.zeros_like(acc_gg)
        acc_pg[...] = jnp.zeros_like(acc_pg)
        if noise_mode == "hw":
            pltpu.prng_seed(seed_ref[0])  # seed once; state persists across steps

    p = pred_ref[...].astype(jnp.float32)
    g = gt_ref[...].astype(jnp.float32)

    # ground_truth + eps * U[0,1) noise (torch.rand equivalent).
    if noise_mode == "hw":
        # On-chip hardware PRNG: signed 32-bit bits -> [0, eps) with one convert,
        # one mul and one add (eps folded into the constants).
        bits = pltpu.bitcast(pltpu.prng_random_bits(g.shape), jnp.int32)
        g = g + (bits.astype(jnp.float32) * jnp.float32(eps * 2.0 ** -32)
                 + jnp.float32(0.5 * eps))
    elif noise_mode == "input":
        g = g + jnp.float32(eps) * noise_ref[...].astype(jnp.float32)

    def _accumulate(pv, gv):
        # Register-resident partial sums into one vreg (8,128) per moment:
        # same number of VALU ops as full-block accumulators, but only 5 small
        # VMEM read-modify-writes per grid step instead of 5 full blocks.
        p3 = pv.reshape(block_rows // 8, 8, LANE)
        g3 = gv.reshape(block_rows // 8, 8, LANE)
        acc_p[...] += p3.sum(axis=0)
        acc_g[...] += g3.sum(axis=0)
        acc_pp[...] += (p3 * p3).sum(axis=0)
        acc_gg[...] += (g3 * g3).sum(axis=0)
        acc_pg[...] += (p3 * g3).sum(axis=0)

    if needs_mask:
        # All invalid elements (lane pad + grid over-coverage) live in the final
        # block, so only that step pays for the iota/compare/select mask.
        @pl.when(i < last)
        def _acc_body():
            _accumulate(p, g)

        @pl.when(i == last)
        def _acc_tail():
            row0 = i * block_rows
            rows_idx = jax.lax.broadcasted_iota(jnp.int32, p.shape, 0) + row0
            lane_idx = jax.lax.broadcasted_iota(jnp.int32, p.shape, 1)
            valid = rows_idx * LANE + lane_idx < n_elems
            # Mask AFTER the noise add so padded/garbage lanes are zeroed.
            _accumulate(jnp.where(valid, p, 0.0), jnp.where(valid, g, 0.0))
    else:
        _accumulate(p, g)

    # Finalize once: cross-lane reduce the five vreg partials, then scalar math.
    @pl.when(i == last)
    def _finalize():
        n = jnp.float32(n_elems)
        s_p = jnp.sum(acc_p[...])
        s_g = jnp.sum(acc_g[...])
        s_pp = jnp.sum(acc_pp[...])
        s_gg = jnp.sum(acc_gg[...])
        s_pg = jnp.sum(acc_pg[...])

        mean_p = s_p / n
        mean_g = s_g / n
        sxx = s_pp - s_p * mean_p          # sum((pred - mean_pred)^2)
        syy = s_gg - s_g * mean_g          # sum((gt   - mean_gt  )^2)
        sxy = s_pg - s_p * mean_g          # sum(v_pred * v_gt)

        # torch.var / torch.std default to unbiased (divide by N-1).
        var_p = sxx / (n - 1.0)
        var_g = syy / (n - 1.0)
        # 2*cor*sd_gt*sd_pred == 2*sxy/(n-1); avoids sqrt(sxx)*sqrt(syy) NaN path.
        numerator = 2.0 * sxy / (n - 1.0)
        denominator = var_g + var_p + (mean_g - mean_p) ** 2
        out_ref[0, 0] = 1.0 - numerator / denominator


def ccc_loss(prediction, ground_truth, key, eps=1e-4, max_block_rows=MAX_BLOCK_ROWS):
    """1 - CCC(prediction, ground_truth + eps*U[0,1)). Returns an f32 scalar."""
    assert prediction.shape == ground_truth.shape
    n = int(prediction.size)
    assert n > 1, "CCC needs at least 2 elements (unbiased variance)."

    on_tpu = jax.devices()[0].platform == "tpu"
    if eps == 0.0:
        noise_mode = "none"
    elif on_tpu:
        noise_mode = "hw"       # on-chip hardware PRNG, no extra HBM stream
    else:
        noise_mode = "input"    # fallback (interpret / CPU): stream noise from HBM

    pred = prediction.reshape(-1)
    gt = ground_truth.reshape(-1)

    # Only pad when numel is not a multiple of 128.
    lane_pad = (-n) % LANE
    if lane_pad:
        # TODO(synk): this copies both inputs; fold the <128-element tail in via a
        # scalar-prefetched partial sum instead of jnp.pad to avoid the copy.
        pred = jnp.pad(pred, (0, lane_pad))
        gt = jnp.pad(gt, (0, lane_pad))
    rows = (n + lane_pad) // LANE

    sub = _sublane_tile(pred.dtype, gt.dtype)
    block_rows = min(_round_up(max_block_rows, sub),
                     max(sub, _round_up(rows, sub)))
    grid_len = pl.cdiv(rows, block_rows)
    covered = grid_len * block_rows * LANE
    needs_mask = covered != n

    p2 = pred.reshape(rows, LANE)
    g2 = gt.reshape(rows, LANE)

    # Per-call seed for the in-kernel hardware PRNG (torch.rand equivalent).
    seed = jax.random.randint(key, (1,), 0, jnp.iinfo(jnp.int32).max, dtype=jnp.int32)

    block = pl.BlockSpec((block_rows, LANE), lambda i, seed_ref: (i, 0))
    in_specs = [block, block]
    inputs = [p2, g2]
    if noise_mode == "input":
        noise = jax.random.uniform(jax.random.fold_in(key, 1), (rows, LANE),
                                   dtype=jnp.float32)
        in_specs.append(pl.BlockSpec((block_rows, LANE), lambda i, seed_ref: (i, 0)))
        inputs.append(noise)

    kernel = functools.partial(
        _ccc_kernel,
        n_elems=n,
        eps=float(eps),
        block_rows=block_rows,
        needs_mask=needs_mask,
        noise_mode=noise_mode,
    )

    out = pl.pallas_call(
        kernel,
        out_shape=jax.ShapeDtypeStruct((1, 1), jnp.float32),
        grid_spec=pltpu.PrefetchScalarGridSpec(
            num_scalar_prefetch=1,
            grid=(grid_len,),
            in_specs=in_specs,
            out_specs=pl.BlockSpec(memory_space=pltpu.SMEM),
            scratch_shapes=[pltpu.VMEM((8, LANE), jnp.float32)] * 5,
        ),
        compiler_params=pltpu.CompilerParams(
            dimension_semantics=("arbitrary",),
            vmem_limit_bytes=32 * 1024 * 1024,
        ),
    )(seed, *inputs)
    return out[0, 0]


def _ccc_loss_ref(prediction, ground_truth, noise, eps=1e-4):
    """Pure-JAX reference mirroring the PyTorch forward (explicit noise array)."""
    p = prediction.astype(jnp.float32)
    g = ground_truth.astype(jnp.float32) + eps * noise
    mean_g = jnp.mean(g)
    mean_p = jnp.mean(p)
    var_g = jnp.var(g, ddof=1)
    var_p = jnp.var(p, ddof=1)
    v_p = p - mean_p
    v_g = g - mean_g
    cor = jnp.sum(v_p * v_g) / (jnp.sqrt(jnp.sum(v_p ** 2)) * jnp.sqrt(jnp.sum(v_g ** 2)))
    sd_g = jnp.std(g, ddof=1)
    sd_p = jnp.std(p, ddof=1)
    num = 2 * cor * sd_g * sd_p
    den = var_g + var_p + (mean_g - mean_p) ** 2
    return 1.0 - num / den


if __name__ == "__main__":
    key = jax.random.PRNGKey(0)
    k1, k2, k3 = jax.random.split(key, 3)

    shape = (2, 4, 16, 16)  # small NCHW-like shape
    pred = jax.random.normal(k1, shape, dtype=jnp.float32)
    gt = jax.random.normal(k2, shape, dtype=jnp.float32)

    # Exact check (eps=0 -> no noise, comparable math path).
    loss0 = ccc_loss(pred, gt, k3, eps=0.0)
    jax.block_until_ready(loss0)
    ref0 = _ccc_loss_ref(pred, gt, jnp.zeros(shape, jnp.float32), eps=0.0)
    assert jnp.allclose(loss0, ref0, rtol=1e-4, atol=1e-5), (loss0, ref0)

    # eps=1e-4 noise (hardware PRNG on TPU, explicit stream elsewhere): the
    # perturbation to the loss is O(eps), so the result must sit in a tight band
    # around the noise-free reference.
    loss = ccc_loss(pred, gt, k3, eps=1e-4)
    jax.block_until_ready(loss)
    assert bool(jnp.isfinite(loss)), loss
    assert float(jnp.abs(loss - ref0)) < 1e-3, (loss, ref0)

    print("KERNEL_OK")
</pallas_src>

<mosaic_0001>
module attributes {stable_mosaic.version = 11 : i64} {
  func.func @_ccc_kernel(%arg0: i32, %arg1: memref<1xi32, #tpu.memory_space<smem>>, %arg2: memref<16x128xf32, #tpu.memory_space<vmem>>, %arg3: memref<16x128xf32, #tpu.memory_space<vmem>>, %arg4: memref<1x1xf32, #tpu.memory_space<smem>>, %arg5: memref<8x128xf32, #tpu.memory_space<vmem>>, %arg6: memref<8x128xf32, #tpu.memory_space<vmem>>, %arg7: memref<8x128xf32, #tpu.memory_space<vmem>>, %arg8: memref<8x128xf32, #tpu.memory_space<vmem>>, %arg9: memref<8x128xf32, #tpu.memory_space<vmem>>) attributes {dimension_semantics = [#tpu.dimension_semantics<arbitrary>], iteration_bounds = array<i64: 1>, scalar_prefetch = 1 : i64, scratch_operands = 5 : i64, tpu.core_type = #tpu.core_type<tc>, window_params = [{transform_indices = @transform_0, window_bounds = array<i64: 16, 128>}, {transform_indices = @transform_1, window_bounds = array<i64: 16, 128>}, {transform_indices = @transform_2, window_bounds = array<i64: 1, 1>}]} {
    %c0_i32 = arith.constant 0 : i32
    %0 = arith.cmpi eq, %arg0, %c0_i32 : i32
    %1 = arith.extui %0 : i1 to i32
    %c0_i32_0 = arith.constant 0 : i32
    %2 = arith.cmpi ne, %1, %c0_i32_0 : i32
    scf.if %2 {
      %cst_30 = arith.constant 0.000000e+00 : f32
      %33 = vector.broadcast %cst_30 : f32 to vector<8x128xf32>
      %c0_31 = arith.constant 0 : index
      %c0_32 = arith.constant 0 : index
      %34 = vector.load %arg5[%c0_31, %c0_32] : memref<8x128xf32, #tpu.memory_space<vmem>>, vector<8x128xf32>
      tpu.vector_store %arg5[%c0_31, %c0_32], %33 {strides = array<i32>} : memref<8x128xf32, #tpu.memory_space<vmem>>, vector<8x128xf32>,
      %cst_33 = arith.constant 0.000000e+00 : f32
      %35 = vector.broadcast %cst_33 : f32 to vector<8x128xf32>
      %c0_34 = arith.constant 0 : index
      %c0_35 = arith.constant 0 : index
      %36 = vector.load %arg6[%c0_34, %c0_35] : memref<8x128xf32, #tpu.memory_space<vmem>>, vector<8x128xf32>
      tpu.vector_store %arg6[%c0_34, %c0_35], %35 {strides = array<i32>} : memref<8x128xf32, #tpu.memory_space<vmem>>, vector<8x128xf32>,
      %cst_36 = arith.constant 0.000000e+00 : f32
      %37 = vector.broadcast %cst_36 : f32 to vector<8x128xf32>
      %c0_37 = arith.constant 0 : index
      %c0_38 = arith.constant 0 : index
      %38 = vector.load %arg7[%c0_37, %c0_38] : memref<8x128xf32, #tpu.memory_space<vmem>>, vector<8x128xf32>
      tpu.vector_store %arg7[%c0_37, %c0_38], %37 {strides = array<i32>} : memref<8x128xf32, #tpu.memory_space<vmem>>, vector<8x128xf32>,
      %cst_39 = arith.constant 0.000000e+00 : f32
      %39 = vector.broadcast %cst_39 : f32 to vector<8x128xf32>
      %c0_40 = arith.constant 0 : index
      %c0_41 = arith.constant 0 : index
      %40 = vector.load %arg8[%c0_40, %c0_41] : memref<8x128xf32, #tpu.memory_space<vmem>>, vector<8x128xf32>
      tpu.vector_store %arg8[%c0_40, %c0_41], %39 {strides = array<i32>} : memref<8x128xf32, #tpu.memory_space<vmem>>, vector<8x128xf32>,
      %cst_42 = arith.constant 0.000000e+00 : f32
      %41 = vector.broadcast %cst_42 : f32 to vector<8x128xf32>
      %c0_43 = arith.constant 0 : index
      %c0_44 = arith.constant 0 : index
      %42 = vector.load %arg9[%c0_43, %c0_44] : memref<8x128xf32, #tpu.memory_space<vmem>>, vector<8x128xf32>
      tpu.vector_store %arg9[%c0_43, %c0_44], %41 {strides = array<i32>} : memref<8x128xf32, #tpu.memory_space<vmem>>, vector<8x128xf32>,
    } else {
    }
    %c0 = arith.constant 0 : index
    %c0_1 = arith.constant 0 : index
    %3 = vector.load %arg2[%c0, %c0_1] : memref<16x128xf32, #tpu.memory_space<vmem>>, vector<16x128xf32>
    %c0_2 = arith.constant 0 : index
    %c0_3 = arith.constant 0 : index
    %4 = vector.load %arg3[%c0_2, %c0_3] : memref<16x128xf32, #tpu.memory_space<vmem>>, vector<16x128xf32>
    %5 = vector.shape_cast %3 : vector<16x128xf32> to vector<2x8x128xf32>
    %6 = vector.shape_cast %4 : vector<16x128xf32> to vector<2x8x128xf32>
    %c0_4 = arith.constant 0 : index
    %c0_5 = arith.constant 0 : index
    %7 = vector.load %arg5[%c0_4, %c0_5] : memref<8x128xf32, #tpu.memory_space<vmem>>, vector<8x128xf32>
    %cst = arith.constant dense<0.000000e+00> : vector<8x128xf32>
    %8 = vector.multi_reduction <add>, %5, %cst [0] : vector<2x8x128xf32> to vector<8x128xf32>
    %9 = arith.addf %7, %8 : vector<8x128xf32>
    %c0_6 = arith.constant 0 : index
    %c0_7 = arith.constant 0 : index
    %10 = vector.load %arg5[%c0_6, %c0_7] : memref<8x128xf32, #tpu.memory_space<vmem>>, vector<8x128xf32>
    tpu.vector_store %arg5[%c0_6, %c0_7], %9 {strides = array<i32>} : memref<8x128xf32, #tpu.memory_space<vmem>>, vector<8x128xf32>,
    %c0_8 = arith.constant 0 : index
    %c0_9 = arith.constant 0 : index
    %11 = vector.load %arg6[%c0_8, %c0_9] : memref<8x128xf32, #tpu.memory_space<vmem>>, vector<8x128xf32>
    %cst_10 = arith.constant dense<0.000000e+00> : vector<8x128xf32>
    %12 = vector.multi_reduction <add>, %6, %cst_10 [0] : vector<2x8x128xf32> to vector<8x128xf32>
    %13 = arith.addf %11, %12 : vector<8x128xf32>
    %c0_11 = arith.constant 0 : index
    %c0_12 = arith.constant 0 : index
    %14 = vector.load %arg6[%c0_11, %c0_12] : memref<8x128xf32, #tpu.memory_space<vmem>>, vector<8x128xf32>
    tpu.vector_store %arg6[%c0_11, %c0_12], %13 {strides = array<i32>} : memref<8x128xf32, #tpu.memory_space<vmem>>, vector<8x128xf32>,
    %c0_13 = arith.constant 0 : index
    %c0_14 = arith.constant 0 : index
    %15 = vector.load %arg7[%c0_13, %c0_14] : memref<8x128xf32, #tpu.memory_space<vmem>>, vector<8x128xf32>
    %16 = arith.mulf %5, %5 : vector<2x8x128xf32>
    %cst_15 = arith.constant dense<0.000000e+00> : vector<8x128xf32>
    %17 = vector.multi_reduction <add>, %16, %cst_15 [0] : vector<2x8x128xf32> to vector<8x128xf32>
    %18 = arith.addf %15, %17 : vector<8x128xf32>
    %c0_16 = arith.constant 0 : index
    %c0_17 = arith.constant 0 : index
    %19 = vector.load %arg7[%c0_16, %c0_17] : memref<8x128xf32, #tpu.memory_space<vmem>>, vector<8x128xf32>
    tpu.vector_store %arg7[%c0_16, %c0_17], %18 {strides = array<i32>} : memref<8x128xf32, #tpu.memory_space<vmem>>, vector<8x128xf32>,
    %c0_18 = arith.constant 0 : index
    %c0_19 = arith.constant 0 : index
    %20 = vector.load %arg8[%c0_18, %c0_19] : memref<8x128xf32, #tpu.memory_space<vmem>>, vector<8x128xf32>
    %21 = arith.mulf %6, %6 : vector<2x8x128xf32>
    %cst_20 = arith.constant dense<0.000000e+00> : vector<8x128xf32>
    %22 = vector.multi_reduction <add>, %21, %cst_20 [0] : vector<2x8x128xf32> to vector<8x128xf32>
    %23 = arith.addf %20, %22 : vector<8x128xf32>
    %c0_21 = arith.constant 0 : index
    %c0_22 = arith.constant 0 : index
    %24 = vector.load %arg8[%c0_21, %c0_22] : memref<8x128xf32, #tpu.memory_space<vmem>>, vector<8x128xf32>
    tpu.vector_store %arg8[%c0_21, %c0_22], %23 {strides = array<i32>} : memref<8x128xf32, #tpu.memory_space<vmem>>, vector<8x128xf32>,
    %c0_23 = arith.constant 0 : index
    %c0_24 = arith.constant 0 : index
    %25 = vector.load %arg9[%c0_23, %c0_24] : memref<8x128xf32, #tpu.memory_space<vmem>>, vector<8x128xf32>
    %26 = arith.mulf %5, %6 : vector<2x8x128xf32>
    %cst_25 = arith.constant dense<0.000000e+00> : vector<8x128xf32>
    %27 = vector.multi_reduction <add>, %26, %cst_25 [0] : vector<2x8x128xf32> to vector<8x128xf32>
    %28 = arith.addf %25, %27 : vector<8x128xf32>
    %c0_26 = arith.constant 0 : index
    %c0_27 = arith.constant 0 : index
    %29 = vector.load %arg9[%c0_26, %c0_27] : memref<8x128xf32, #tpu.memory_space<vmem>>, vector<8x128xf32>
    tpu.vector_store %arg9[%c0_26, %c0_27], %28 {strides = array<i32>} : memref<8x128xf32, #tpu.memory_space<vmem>>, vector<8x128xf32>,
    %c0_i32_28 = arith.constant 0 : i32
    %30 = arith.cmpi eq, %arg0, %c0_i32_28 : i32
    %31 = arith.extui %30 : i1 to i32
    %c0_i32_29 = arith.constant 0 : i32
    %32 = arith.cmpi ne, %31, %c0_i32_29 : i32
    scf.if %32 {
      %c0_30 = arith.constant 0 : index
      %c0_31 = arith.constant 0 : index
      %33 = vector.load %arg5[%c0_30, %c0_31] : memref<8x128xf32, #tpu.memory_space<vmem>>, vector<8x128xf32>
      %34 = vector.shape_cast %33 : vector<8x128xf32> to vector<1x8x128xf32>
      %cst_32 = arith.constant dense<0.000000e+00> : vector<1xf32>
      %35 = vector.multi_reduction <add>, %34, %cst_32 [1, 2] : vector<1x8x128xf32> to vector<1xf32>
      %36 = vector.shape_cast %35 : vector<1xf32> to vector<1x1x1xf32>
      %37 = vector.extract %36[0, 0, 0] : f32 from vector<1x1x1xf32>
      %c0_33 = arith.constant 0 : index
      %c0_34 = arith.constant 0 : index
      %38 = vector.load %arg6[%c0_33, %c0_34] : memref<8x128xf32, #tpu.memory_space<vmem>>, vector<8x128xf32>
      %39 = vector.shape_cast %38 : vector<8x128xf32> to vector<1x8x128xf32>
      %cst_35 = arith.constant dense<0.000000e+00> : vector<1xf32>
      %40 = vector.multi_reduction <add>, %39, %cst_35 [1, 2] : vector<1x8x128xf32> to vector<1xf32>
      %41 = vector.shape_cast %40 : vector<1xf32> to vector<1x1x1xf32>
      %42 = vector.extract %41[0, 0, 0] : f32 from vector<1x1x1xf32>
      %c0_36 = arith.constant 0 : index
      %c0_37 = arith.constant 0 : index
      %43 = vector.load %arg7[%c0_36, %c0_37] : memref<8x128xf32, #tpu.memory_space<vmem>>, vector<8x128xf32>
      %44 = vector.shape_cast %43 : vector<8x128xf32> to vector<1x8x128xf32>
      %cst_38 = arith.constant dense<0.000000e+00> : vector<1xf32>
      %45 = vector.multi_reduction <add>, %44, %cst_38 [1, 2] : vector<1x8x128xf32> to vector<1xf32>
      %46 = vector.shape_cast %45 : vector<1xf32> to vector<1x1x1xf32>
      %47 = vector.extract %46[0, 0, 0] : f32 from vector<1x1x1xf32>
      %c0_39 = arith.constant 0 : index
      %c0_40 = arith.constant 0 : index
      %48 = vector.load %arg8[%c0_39, %c0_40] : memref<8x128xf32, #tpu.memory_space<vmem>>, vector<8x128xf32>
      %49 = vector.shape_cast %48 : vector<8x128xf32> to vector<1x8x128xf32>
      %cst_41 = arith.constant dense<0.000000e+00> : vector<1xf32>
      %50 = vector.multi_reduction <add>, %49, %cst_41 [1, 2] : vector<1x8x128xf32> to vector<1xf32>
      %51 = vector.shape_cast %50 : vector<1xf32> to vector<1x1x1xf32>
      %52 = vector.extract %51[0, 0, 0] : f32 from vector<1x1x1xf32>
      %c0_42 = arith.constant 0 : index
      %c0_43 = arith.constant 0 : index
      %53 = vector.load %arg9[%c0_42, %c0_43] : memref<8x128xf32, #tpu.memory_space<vmem>>, vector<8x128xf32>
      %54 = vector.shape_cast %53 : vector<8x128xf32> to vector<1x8x128xf32>
      %cst_44 = arith.constant dense<0.000000e+00> : vector<1xf32>
      %55 = vector.multi_reduction <add>, %54, %cst_44 [1, 2] : vector<1x8x128xf32> to vector<1xf32>
      %56 = vector.shape_cast %55 : vector<1xf32> to vector<1x1x1xf32>
      %57 = vector.extract %56[0, 0, 0] : f32 from vector<1x1x1xf32>
      %cst_45 = arith.constant 2.048000e+03 : f32
      %58 = arith.divf %37, %cst_45 : f32
      %cst_46 = arith.constant 2.048000e+03 : f32
      %59 = arith.divf %42, %cst_46 : f32
      %60 = arith.mulf %37, %58 : f32
      %61 = arith.subf %47, %60 : f32
      %62 = arith.mulf %42, %59 : f32
      %63 = arith.subf %52, %62 : f32
      %64 = arith.mulf %37, %59 : f32
      %65 = arith.subf %57, %64 : f32
      %cst_47 = arith.constant 2.048000e+03 : f32
      %cst_48 = arith.constant 1.000000e+00 : f32
      %66 = arith.subf %cst_47, %cst_48 : f32
      %67 = arith.divf %61, %66 : f32
      %cst_49 = arith.constant 2.048000e+03 : f32
      %cst_50 = arith.constant 1.000000e+00 : f32
      %68 = arith.subf %cst_49, %cst_50 : f32
      %69 = arith.divf %63, %68 : f32
      %cst_51 = arith.constant 2.000000e+00 : f32
      %70 = arith.mulf %cst_51, %65 : f32
      %cst_52 = arith.constant 2.048000e+03 : f32
      %cst_53 = arith.constant 1.000000e+00 : f32
      %71 = arith.subf %cst_52, %cst_53 : f32
      %72 = arith.divf %70, %71 : f32
      %73 = arith.addf %69, %67 : f32
      %74 = arith.subf %59, %58 : f32
      %75 = arith.mulf %74, %74 : f32
      %76 = arith.addf %73, %75 : f32
      %77 = arith.divf %72, %76 : f32
      %cst_54 = arith.constant 1.000000e+00 : f32
      %78 = arith.subf %cst_54, %77 : f32
      %c0_55 = arith.constant 0 : index
      %c0_56 = arith.constant 0 : index
      %79 = memref.load %arg4[%c0_55, %c0_56] : memref<1x1xf32, #tpu.memory_space<smem>>
      memref.store %78, %arg4[%c0_55, %c0_56] : memref<1x1xf32, #tpu.memory_space<smem>>
    } else {
    }
    return
  }
  func.func @transform_0(%arg0: i32, %arg1: memref<1xi32, #tpu.memory_space<smem>>) -> (i32, i32) {
    %c0_i32 = arith.constant 0 : i32
    %c0_i32_0 = arith.constant 0 : i32
    return %arg0, %c0_i32 : i32, i32
  }
  func.func @transform_1(%arg0: i32, %arg1: memref<1xi32, #tpu.memory_space<smem>>) -> (i32, i32) {
    %c0_i32 = arith.constant 0 : i32
    %c0_i32_0 = arith.constant 0 : i32
    return %arg0, %c0_i32 : i32, i32
  }
  func.func @transform_2(%arg0: i32, %arg1: memref<1xi32, #tpu.memory_space<smem>>) -> (i32, i32) {
    %c0_i32 = arith.constant 0 : i32
    %c0_i32_0 = arith.constant 0 : i32
    %c0_i32_1 = arith.constant 0 : i32
    return %c0_i32, %c0_i32_0 : i32, i32
  }
}

</mosaic_0001>

<llo_original>
// kernel: tpu_custom_call.1
$region0: #{tpu_custom_call.1}
  #allocation0 [shape = 'u32[]', space=smem, size = 0x4, offset = 0x4, fixed_abs, tag = 'smem constant byte address 0x4 - core index']
  #allocation1 [shape = 'u32[144,128]{1,0:T(1,128)}', space=vmem, size = 0x12000, scoped, tag = 'internal scratch']
  #allocation2 [shape = 'f32[8,128]{1,0:T(8,128)}', space=vmem, size = 0x1000, scoped, tag = 'scratch operand']
  #allocation3 [shape = 'f32[8,128]{1,0:T(8,128)}', space=vmem, size = 0x1000, scoped, tag = 'scratch operand']
  #allocation4 [shape = 'f32[8,128]{1,0:T(8,128)}', space=vmem, size = 0x1000, scoped, tag = 'scratch operand']
  #allocation5 [shape = 'f32[8,128]{1,0:T(8,128)}', space=vmem, size = 0x1000, scoped, tag = 'scratch operand']
  #allocation6 [shape = 'f32[8,128]{1,0:T(8,128)}', space=vmem, size = 0x1000, scoped, tag = 'scratch operand']
  #allocation7 [shape = 's32[1]{0}', space=sflag, size = 0x4, scoped, tag = 'scoped memory for tpu_custom_call.1']
  #allocation8 [shape = 's32[1]{0:T(128)S(6)}', space=smem, size = 0x200, scoped, tag = 'prefetched SMEM operand 0']
  %s0 = inlined_call_operand.<no memory space> [shape: s32[1], index: 0, kind: input, shape index: {}]
  %s1 = inlined_call_operand.hbm [shape: f32[16,128], index: 1, kind: input, shape index: {}]
  %s2 = inlined_call_operand.hbm [shape: f32[16,128], index: 2, kind: input, shape index: {}]
  %s3 = inlined_call_operand.hbm [shape: f32[1,1], index: 3, kind: output, shape index: {}]
  %s4 = sld [smem:[#allocation0]]
  $region34: #{tpu_custom_call.1} parent=0
    _
  %s6 = ssub.s32 1, %s4
  %s7 = scalar_select 0, %s6, %s4
  %8 = sst [smem:[#allocation8]] %s0
  $region1: #{tpu_custom_call.1} parent=0
    #allocation9 [shape = 'u8[8192]{0}', space=vmem, size = 0x2000, scoped, tag = 'input window, operand 1, single buffered']
    #allocation10 [shape = 's32[1]{0}', space=sflag, size = 0x4, scoped, tag = 'scoped memory for tpu_custom_call.1']
    #allocation11 [shape = 's32[1]{0}', space=sflag, size = 0x4, scoped, tag = 'scoped memory for tpu_custom_call.1']
    #allocation12 [shape = 'u8[8192]{0}', space=vmem, size = 0x2000, scoped, tag = 'input window, operand 2, single buffered']
    #allocation13 [shape = 's32[1]{0}', space=sflag, size = 0x4, scoped, tag = 'scoped memory for tpu_custom_call.1']
    #allocation14 [shape = 'u8[512]{0}', space=smem, size = 0x200, scoped, tag = 'output window, operand 0, single buffered']
    %9 = vsyncpa [#allocation10], 0
    %10 = vsyncpa [#allocation13], 0
    %11 = vsyncpa [#allocation11], 0
    // Predicated region
    $region2: #{tpu_custom_call.1} parent=1 // pred_check
      _
    $region3: #{tpu_custom_call.1} parent=1 // pred_check_branch
      %13 = sbr.rel (0) target = $region5
    $region4: #{tpu_custom_call.1} parent=1 // pred_region
      %s15 = ssub.s32 256, 256
      %16 = vsyncadd [#allocation10], %s15
      %s17 = sshll.u32 [#allocation9], 4
      %s18 = int_to_ptr.vmem [resolvable:$true] %s17
      %23 = dma.hbm_to_vmem [thread:$0]  %s1, 256, %s18, [#allocation10], 128, 128, 8
    $region5: #{tpu_custom_call.1} parent=1 // pred_fallthru
      _
    // Predicated region
    $region6: #{tpu_custom_call.1} parent=1 // pred_check
      _
    $region7: #{tpu_custom_call.1} parent=1 // pred_check_branch
      %25 = sbr.rel (0) target = $region9
    $region8: #{tpu_custom_call.1} parent=1 // pred_region
      %s27 = ssub.s32 256, 256
      %28 = vsyncadd [#allocation13], %s27
      %s29 = sshll.u32 [#allocation12], 4
      %s30 = int_to_ptr.vmem [resolvable:$true] %s29
      %35 = dma.hbm_to_vmem [thread:$0]  %s2, 256, %s30, [#allocation13], 128, 128, 8
    $region9: #{tpu_custom_call.1} parent=1 // pred_fallthru
      _
    // Predicated region
    $region10: #{tpu_custom_call.1} parent=1 // pred_check
      _
    $region11: #{tpu_custom_call.1} parent=1 // pred_check_branch
      %37 = sbr.rel (0) target = $region13
    $region12: #{tpu_custom_call.1} parent=1 // pred_region
      %38 = dma.done [#allocation10], 256
    $region13: #{tpu_custom_call.1} parent=1 // pred_fallthru
      _
    // Predicated region
    $region14: #{tpu_custom_call.1} parent=1 // pred_check
      _
    $region15: #{tpu_custom_call.1} parent=1 // pred_check_branch
      %40 = sbr.rel (0) target = $region17
    $region16: #{tpu_custom_call.1} parent=1 // pred_region
      %41 = dma.done [#allocation13], 256
    $region17: #{tpu_custom_call.1} parent=1 // pred_fallthru
      _
    %p42 = scmp.eq.s32.totalorder 0, 0
    // Predicated region
    $region18: #{tpu_custom_call.1} parent=1 // pred_check
      %p43 = pneg %p42
    $region19: #{tpu_custom_call.1} parent=1 // pred_check_branch
      %45 = sbr.rel (%p43) target = $region21
    $region20: #{tpu_custom_call.1} parent=1 // pred_region
      %46 = vst [vmem:[#allocation2] sm:$0xff] 0.0
      %47 = vst [vmem:[#allocation3] sm:$0xff] 0.0
      %48 = vst [vmem:[#allocation4] sm:$0xff] 0.0
      %49 = vst [vmem:[#allocation5] sm:$0xff] 0.0
      %50 = vst [vmem:[#allocation6] sm:$0xff] 0.0
    $region21: #{tpu_custom_call.1} parent=1 // pred_fallthru
      _
    %v51 = vld [vmem:[#allocation9] sm:$0xff]
    %v52 = vld [vmem:[#allocation9 + $0x8] sm:$0xff]
    %v53 = vld [vmem:[#allocation12] sm:$0xff]
    %v54 = vld [vmem:[#allocation12 + $0x8] sm:$0xff]
    %v55 = vld [vmem:[#allocation2] sm:$0xff]
    %v56 = vadd.f32 %v51, %v52
    %v57 = vadd.f32 %v55, %v56
    %58 = vst [vmem:[#allocation2] sm:$0xff] %v57
    %v59 = vld [vmem:[#allocation3] sm:$0xff]
    %v60 = vadd.f32 %v53, %v54
    %v61 = vadd.f32 %v59, %v60
    %62 = vst [vmem:[#allocation3] sm:$0xff] %v61
    %v63 = vld [vmem:[#allocation4] sm:$0xff]
    %v64 = vmul.f32 %v51, %v51
    %v65 = vmul.f32 %v52, %v52
    %v66 = vadd.f32 %v64, %v65
    %v67 = vadd.f32 %v63, %v66
    %68 = vst [vmem:[#allocation4] sm:$0xff] %v67
    %v69 = vld [vmem:[#allocation5] sm:$0xff]
    %v70 = vmul.f32 %v53, %v53
    %v71 = vmul.f32 %v54, %v54
    %v72 = vadd.f32 %v70, %v71
    %v73 = vadd.f32 %v69, %v72
    %74 = vst [vmem:[#allocation5] sm:$0xff] %v73
    %v75 = vld [vmem:[#allocation6] sm:$0xff]
    %v76 = vmul.f32 %v51, %v53
    %v77 = vmul.f32 %v52, %v54
    %v78 = vadd.f32 %v76, %v77
    %v79 = vadd.f32 %v75, %v78
    %80 = vst [vmem:[#allocation6] sm:$0xff] %v79
    // Predicated region
    $region22: #{tpu_custom_call.1} parent=1 // pred_check
      %p81 = pneg %p42
    $region23: #{tpu_custom_call.1} parent=1 // pred_check_branch
      %83 = sbr.rel (%p81) target = $region25
    $region24: #{tpu_custom_call.1} parent=1 // pred_region
      %v84 = vld [vmem:[#allocation2] sm:$0xff]
      %85 = vadd.xlane.f32.xlu0 %v84
      %v86 = vpop.xlane.xlu0 %85
      %v87 = vrot.slane %v86, 4
      %v88 = vadd.f32 %v86, %v87
      %v89 = vrot.slane %v88, 2
      %v90 = vadd.f32 %v88, %v89
      %v91 = vrot.slane %v90, 1
      %v92 = vadd.f32 %v90, %v91
      %s93 = vtos %v92
      %v94 = vld [vmem:[#allocation3] sm:$0xff]
      %95 = vadd.xlane.f32.xlu0 %v94
      %v96 = vpop.xlane.xlu0 %95
      %v97 = vrot.slane %v96, 4
      %v98 = vadd.f32 %v96, %v97
      %v99 = vrot.slane %v98, 2
      %v100 = vadd.f32 %v98, %v99
      %v101 = vrot.slane %v100, 1
      %v102 = vadd.f32 %v100, %v101
      %s103 = vtos %v102
      %v104 = vld [vmem:[#allocation4] sm:$0xff]
      %105 = vadd.xlane.f32.xlu0 %v104
      %v106 = vpop.xlane.xlu0 %105
      %v107 = vrot.slane %v106, 4
      %v108 = vadd.f32 %v106, %v107
      %v109 = vrot.slane %v108, 2
      %v110 = vadd.f32 %v108, %v109
      %v111 = vrot.slane %v110, 1
      %v112 = vadd.f32 %v110, %v111
      %s113 = vtos %v112
      %v114 = vld [vmem:[#allocation5] sm:$0xff]
      %115 = vadd.xlane.f32.xlu0 %v114
      %v116 = vpop.xlane.xlu0 %115
      %v117 = vrot.slane %v116, 4
      %v118 = vadd.f32 %v116, %v117
      %v119 = vrot.slane %v118, 2
      %v120 = vadd.f32 %v118, %v119
      %v121 = vrot.slane %v120, 1
      %v122 = vadd.f32 %v120, %v121
      %s123 = vtos %v122
      %v124 = vld [vmem:[#allocation6] sm:$0xff]
      %125 = vadd.xlane.f32.xlu0 %v124
      %v126 = vpop.xlane.xlu0 %125
      %v127 = vrot.slane %v126, 4
      %v128 = vadd.f32 %v126, %v127
      %v129 = vrot.slane %v128, 2
      %v130 = vadd.f32 %v128, %v129
      %v131 = vrot.slane %v130, 1
      %v132 = vadd.f32 %v130, %v131
      %s133 = vtos %v132
      %v134 = vrcp.pop 2048.0
      %s135 = vtos %v134
      %s136 = smul.f32 %s93, %s135
      %v137 = vrcp.pop 2048.0
      %s138 = vtos %v137
      %s139 = smul.f32 %s103, %s138
      %s140 = smul.f32 %s93, %s136
      %s141 = ssub.f32 %s113, %s140
      %s142 = smul.f32 %s103, %s139
      %s143 = ssub.f32 %s123, %s142
      %s144 = smul.f32 %s93, %s139
      %s145 = ssub.f32 %s133, %s144
      %v146 = vrcp.pop 2047.0
      %s147 = vtos %v146
      %s148 = smul.f32 %s141, %s147
      %v149 = vrcp.pop 2047.0
      %s150 = vtos %v149
      %s151 = smul.f32 %s143, %s150
      %s152 = smul.f32 %s145, 2.0
      %v153 = vrcp.pop 2047.0
      %s154 = vtos %v153
      %s155 = smul.f32 %s152, %s154
      %s156 = sadd.f32 %s151, %s148
      %s157 = ssub.f32 %s139, %s136
      %s158 = smul.f32 %s157, %s157
      %s159 = sadd.f32 %s156, %s158
      %v160 = vstv %s159
      %v161 = vrcp.pop %v160
      %s162 = vtos %v161
      %s163 = smul.f32 %s155, %s162
      %s164 = ssub.f32 1.0, %s163
      %s165 = scalar_lea.smem [#allocation14], 0
      %166 = sst [smem:[%s165]] %s164
    $region25: #{tpu_custom_call.1} parent=1 // pred_fallthru
      _
    // Predicated region
    $region26: #{tpu_custom_call.1} parent=1 // pred_check
      _
    $region27: #{tpu_custom_call.1} parent=1 // pred_check_branch
      %168 = sbr.rel (0) target = $region29
    $region28: #{tpu_custom_call.1} parent=1 // pred_region
      %s170 = ssub.s32 16, 16
      %171 = vsyncadd [#allocation11], %s170
      %174 = dma.smem_to_hbm [#allocation14], 16, %s3, [#allocation11]
    $region29: #{tpu_custom_call.1} parent=1 // pred_fallthru
      _
    // Predicated region
    $region30: #{tpu_custom_call.1} parent=1 // pred_check
      _
    $region31: #{tpu_custom_call.1} parent=1 // pred_check_branch
      %176 = sbr.rel (0) target = $region33
    $region32: #{tpu_custom_call.1} parent=1 // pred_region
      %177 = dma.done [#allocation11], 16
    $region33: #{tpu_custom_call.1} parent=1 // pred_fallthru
      _
    %178 = sfence
    %179 = vsyncpa [#allocation10], 1
    %180 = vsyncpa [#allocation13], 1
    %181 = vsyncpa [#allocation11], 1

</llo_original>
